<compile_context>
chip_gen: v6e
topology: v6e:2x2x1
jax: 0.10.0
libtpu: 0.0.40
codegen_flags: <defaults>
</compile_context>

<pallas_src>
import functools

import jax
import jax.numpy as jnp
from jax.experimental import pallas as pl
from jax.experimental.pallas import tpu as pltpu


# ---------------------------------------------------------------------------
# helpers
# ---------------------------------------------------------------------------
def _vmem_capacity_bytes():
    """Physical VMEM of the local TPU generation (conservative fallback)."""
    try:
        info = pltpu.get_tpu_info()
        for name in ("vmem_capacity_bytes", "vmem_size_bytes", "vmem_bytes"):
            val = getattr(info, name, None)
            if val:
                return int(min(max(int(val), 32 << 20), 128 << 20))
    except Exception:
        pass
    return 64 << 20  # v7x-sized fallback: safe on every generation


def _se_gate(pooled_col, wb, b1, cr):
    """pooled_col (C,1) f32, wb (C, 2*cr+1)=[w1|w2|b2], b1 (1,cr) -> gate (C,1)."""
    w1 = wb[:, :cr]
    w2 = wb[:, cr:2 * cr]
    b2 = wb[:, 2 * cr:2 * cr + 1]
    # FC1: h[r] = relu(sum_c w1[c,r] * pooled[c] + b1[r])         -> (1, cr)
    h = jnp.maximum(jnp.sum(w1 * pooled_col, axis=0, keepdims=True) + b1, 0.0)
    # FC2: s[c] = sigmoid(sum_r w2[c,r] * h[r] + b2[c])           -> (C, 1)
    s = jnp.sum(w2 * h, axis=1, keepdims=True) + b2
    return jax.nn.sigmoid(s)


# ---------------------------------------------------------------------------
# Fused path: pool + gate + excite + add in one kernel (image read once).
# ---------------------------------------------------------------------------
def _fused_kernel(rgb_ref, depth_ref, w_ref, b1_ref, out_ref, *, inv_hw, cr):
    # rgb/depth/out blocks: (1, C, HW); w: (2, C, 2*cr+1); b1: (2, cr).
    rgb = rgb_ref[0]
    dep = depth_ref[0]

    # Global average pool (f32 accumulation regardless of I/O dtype).
    pooled_r = jnp.sum(rgb.astype(jnp.float32), axis=-1, keepdims=True) * inv_hw
    pooled_d = jnp.sum(dep.astype(jnp.float32), axis=-1, keepdims=True) * inv_hw

    g_r = _se_gate(pooled_r, w_ref[0], b1_ref[0:1], cr)            # (C, 1) f32
    g_d = _se_gate(pooled_d, w_ref[1], b1_ref[1:2], cr)

    out_ref[0] = (rgb * g_r + dep * g_d).astype(out_ref.dtype)


# ---------------------------------------------------------------------------
# Tiled fallback, pass 1: pooled partial sums (pure VPU chunk adds).
# ---------------------------------------------------------------------------
def _pool_kernel(rgb_ref, depth_ref, psum_r_ref, psum_d_ref, *, n_chunks):
    # rgb/depth blocks: (1, C, hw_tile); psum outputs: (1, C, 128) f32, resident
    # across the innermost ("arbitrary") grid axis and used as the accumulator.
    ti = pl.program_id(2)

    @pl.when(ti == 0)
    def _():
        psum_r_ref[...] = jnp.zeros_like(psum_r_ref)
        psum_d_ref[...] = jnp.zeros_like(psum_d_ref)

    if n_chunks <= 8:
        # Small static unroll: VPU adds only, no per-tile XLU lane reduce.
        for ci in range(n_chunks):
            lo = ci * 128
            psum_r_ref[0] += rgb_ref[0, :, lo:lo + 128].astype(jnp.float32)
            psum_d_ref[0] += depth_ref[0, :, lo:lo + 128].astype(jnp.float32)
    else:
        def chunk(ci, carry):
            lo = pl.multiple_of(ci * 128, 128)
            psum_r_ref[0] += rgb_ref[0, :, pl.ds(lo, 128)].astype(jnp.float32)
            psum_d_ref[0] += depth_ref[0, :, pl.ds(lo, 128)].astype(jnp.float32)
            return carry
        jax.lax.fori_loop(0, n_chunks, chunk, 0, unroll=8)


# ---------------------------------------------------------------------------
# Tiled fallback, pass 2: excite + add (pure VPU, lane-dense, fully parallel).
# ---------------------------------------------------------------------------
def _excite_add_kernel(rgb_ref, depth_ref, grgb_ref, gdep_ref, out_ref):
    # blocks: rgb/depth/out (1, C, hw_tile); gates (1, C, 1) -> per-sublane
    # scalar broadcast across the lane (spatial) axis.
    out_ref[0] = (rgb_ref[0] * grgb_ref[0]
                  + depth_ref[0] * gdep_ref[0]).astype(out_ref.dtype)


def _pick_hw_tile(hw_pad, c, itemsize, target_bytes):
    """Largest multiple-of-128 divisor of hw_pad with (C, tile) <= target_bytes."""
    cap_lanes = max(128, (target_bytes // (c * itemsize)) // 128 * 128)
    t = min(hw_pad, cap_lanes)
    t = max(128, (t // 128) * 128)
    while t > 128:
        if hw_pad % t == 0:
            return t
        t -= 128
    return 128


# ---------------------------------------------------------------------------
# Wrapper
# ---------------------------------------------------------------------------
def se_fusion_add(rgb_nchw, depth_nchw, params, *, force_two_pass=False,
                  max_tile_bytes=None):
    """rgb/depth: (B, C, H, W) float32 or bfloat16.  Returns (B, C, H, W)."""
    B, C, H, W = rgb_nchw.shape
    HW = H * W
    dtype = rgb_nchw.dtype
    itemsize = jnp.dtype(dtype).itemsize
    Wp, B1p = params
    cr = int(B1p.shape[-1])
    inv_hw = 1.0 / HW

    # NCHW -> (B, C, HW): pure reshape (channels on sublanes, spatial on lanes).
    rgb = rgb_nchw.reshape(B, C, HW)
    depth = depth_nchw.reshape(B, C, HW)

    cap = _vmem_capacity_bytes()
    # Generation-aware budget (~46 MiB of v7x's 64 MiB, ~92 MiB of v5e/v6e's 128).
    fused_budget = int(cap * 0.72)
    block_bytes = C * HW * itemsize
    # 3 arrays x 2 pipeline buffers + headroom for f32 temporaries in the body.
    fused_need = 6 * block_bytes + 4 * C * HW * 4 + 2 * (Wp.size + B1p.size) * 4

    if (not force_two_pass) and fused_need <= fused_budget:
        # ---- Fused single pass: image bytes moved = 3x (2 reads + 1 write) ---
        img_spec = pl.BlockSpec((1, C, HW), lambda b: (b, 0, 0))
        out = pl.pallas_call(
            functools.partial(_fused_kernel, inv_hw=inv_hw, cr=cr),
            out_shape=jax.ShapeDtypeStruct((B, C, HW), dtype),
            grid_spec=pltpu.PrefetchScalarGridSpec(
                num_scalar_prefetch=0,
                grid=(B,),
                in_specs=[img_spec, img_spec,
                          pl.BlockSpec((2, C, 2 * cr + 1), lambda b: (0, 0, 0)),
                          pl.BlockSpec((2, cr), lambda b: (0, 0))],
                out_specs=img_spec),
            compiler_params=pltpu.CompilerParams(
                dimension_semantics=("parallel",),
                vmem_limit_bytes=int(cap * 0.9)),
            cost_estimate=pl.CostEstimate(
                flops=5 * B * C * HW,
                transcendentals=2 * B * C,
                bytes_accessed=3 * B * C * HW * itemsize),
        )(rgb, depth, Wp, B1p)
        return out.reshape(B, C, H, W)

    # ---- Tiled two-pass fallback (per-batch block too large for VMEM) --------
    HW_pad = ((HW + 127) // 128) * 128
    if HW_pad != HW:  # zero padding: does not perturb the mean (divide by true HW)
        pad = HW_pad - HW
        rgb = jnp.pad(rgb, ((0, 0), (0, 0), (0, pad)))
        depth = jnp.pad(depth, ((0, 0), (0, 0), (0, pad)))

    target = max_tile_bytes if max_tile_bytes is not None else (4 << 20)
    hw_tile = _pick_hw_tile(HW_pad, C, itemsize, target)
    T = HW_pad // hw_tile
    n_outer = 2 if (T >= 2 and T % 2 == 0) else 1   # 2-way spatial split keeps
    n_inner = T // n_outer                           # both v7x TCs busy at B=1
    n_chunks = hw_tile // 128

    tile_bytes = C * hw_tile * itemsize
    vmem_lim = min(int(cap * 0.9),
                   6 * tile_bytes + 3 * C * hw_tile * 4 + (8 << 20))

    # Pass 1: pooled partial sums, shape (B, C, n_outer*128), f32.
    p1_img = pl.BlockSpec((1, C, hw_tile),
                          lambda b, to, ti: (b, 0, to * n_inner + ti))
    p1_out = pl.BlockSpec((1, C, 128), lambda b, to, ti: (b, 0, to))
    psum_r, psum_d = pl.pallas_call(
        functools.partial(_pool_kernel, n_chunks=n_chunks),
        out_shape=(jax.ShapeDtypeStruct((B, C, n_outer * 128), jnp.float32),
                   jax.ShapeDtypeStruct((B, C, n_outer * 128), jnp.float32)),
        grid_spec=pltpu.PrefetchScalarGridSpec(
            num_scalar_prefetch=0,
            grid=(B, n_outer, n_inner),
            in_specs=[p1_img, p1_img],
            out_specs=[p1_out, p1_out]),
        compiler_params=pltpu.CompilerParams(
            dimension_semantics=("parallel", "parallel", "arbitrary"),
            vmem_limit_bytes=vmem_lim),
    )(rgb, depth)

    # Tiny SE FC gates on the (B, C) pooled means in plain JAX (negligible).
    pooled_r = jnp.sum(psum_r, axis=-1) * inv_hw          # (B, C) f32
    pooled_d = jnp.sum(psum_d, axis=-1) * inv_hw

    def jax_gate(pooled, wb, b1):
        w1, w2, b2 = wb[:, :cr], wb[:, cr:2 * cr], wb[:, 2 * cr]
        h = jnp.maximum(pooled @ w1 + b1, 0.0)
        return jax.nn.sigmoid(h @ w2.T + b2)               # (B, C)

    g_r = jax_gate(pooled_r, Wp[0], B1p[0])[:, :, None]    # (B, C, 1) f32
    g_d = jax_gate(pooled_d, Wp[1], B1p[1])[:, :, None]

    # Pass 2: excite + add, lane-dense tiles, fully parallel.
    p2_img = pl.BlockSpec((1, C, hw_tile), lambda b, t: (b, 0, t))
    p2_gate = pl.BlockSpec((1, C, 1), lambda b, t: (b, 0, 0))
    out = pl.pallas_call(
        _excite_add_kernel,
        out_shape=jax.ShapeDtypeStruct((B, C, HW_pad), dtype),
        grid_spec=pltpu.PrefetchScalarGridSpec(
            num_scalar_prefetch=0,
            grid=(B, T),
            in_specs=[p2_img, p2_img, p2_gate, p2_gate],
            out_specs=p2_img),
        compiler_params=pltpu.CompilerParams(
            dimension_semantics=("parallel", "parallel"),
            vmem_limit_bytes=vmem_lim),
        cost_estimate=pl.CostEstimate(
            flops=3 * B * C * HW_pad,
            transcendentals=0,
            bytes_accessed=3 * B * C * HW_pad * itemsize),
    )(rgb, depth, g_r, g_d)

    if HW_pad != HW:
        out = out[:, :, :HW]
    return out.reshape(B, C, H, W)


# ---------------------------------------------------------------------------
# Params + pure-JAX reference
# ---------------------------------------------------------------------------
def init_params(key, channels, reduction=16):
    """Deterministic init of the two SE blocks, packed for the kernels.

    Returns (W, B1):
      W : (2, C, 2*Cr+1) f32; W[i] = [w1 | w2 | b2] for branch i (0=rgb, 1=depth)
           w1[c, r] == PyTorch conv1.weight[r, c, 0, 0]
           w2[c, r] == PyTorch conv2.weight[c, r, 0, 0]
           b2[c]    == PyTorch conv2.bias[c]
      B1: (2, Cr) f32;  B1[i] == PyTorch conv1.bias for branch i
    """
    cr = max(channels // reduction, 1)
    keys = jax.random.split(key, 8)
    s1 = 1.0 / jnp.sqrt(channels)
    s2 = 1.0 / jnp.sqrt(cr)

    def branch(k1, k2, k3, k4):
        w1 = jax.random.uniform(k1, (channels, cr), jnp.float32, -s1, s1)
        b1 = jax.random.uniform(k2, (cr,), jnp.float32, -s1, s1)
        w2 = jax.random.uniform(k3, (channels, cr), jnp.float32, -s2, s2)
        b2 = jax.random.uniform(k4, (channels,), jnp.float32, -s2, s2)
        return jnp.concatenate([w1, w2, b2[:, None]], axis=1), b1

    wb_r, b1_r = branch(*keys[:4])
    wb_d, b1_d = branch(*keys[4:])
    return jnp.stack([wb_r, wb_d]), jnp.stack([b1_r, b1_d])


def se_fusion_add_reference(rgb, depth, params):
    """Pure-JAX reference mirroring the PyTorch forward (NCHW, f32 math)."""
    Wp, B1p = params
    cr = B1p.shape[-1]

    def se(x, wb, b1):
        w1, w2, b2 = wb[:, :cr], wb[:, cr:2 * cr], wb[:, 2 * cr]
        xf = x.astype(jnp.float32)
        pooled = jnp.mean(xf, axis=(2, 3))                  # (B, C)
        h = jnp.maximum(pooled @ w1 + b1, 0.0)              # (B, Cr)
        s = jax.nn.sigmoid(h @ w2.T + b2)                   # (B, C)
        return xf * s[:, :, None, None]

    return se(rgb, Wp[0], B1p[0]) + se(depth, Wp[1], B1p[1])


# ---------------------------------------------------------------------------
# Self-test
# ---------------------------------------------------------------------------
if __name__ == "__main__":
    key = jax.random.PRNGKey(0)

    def check(seed, name, B, C, H, W, dtype, tol, **kwargs):
        kk = jax.random.fold_in(key, seed)
        kr, kd, kp = jax.random.split(kk, 3)
        rgb = jax.random.normal(kr, (B, C, H, W), jnp.float32).astype(dtype)
        depth = jax.random.normal(kd, (B, C, H, W), jnp.float32).astype(dtype)
        params = init_params(kp, C, reduction=16)
        out = jax.block_until_ready(se_fusion_add(rgb, depth, params, **kwargs))
        ref = se_fusion_add_reference(rgb, depth, params)
        assert out.shape == (B, C, H, W), name
        assert out.dtype == dtype, name
        assert jnp.allclose(out.astype(jnp.float32), ref, atol=tol, rtol=tol), \
            f"mismatch vs reference in case {name}"

    # Primary fused single-pass path (per-batch block fits VMEM), f32 and bf16.
    check(0, "fused_f32", 2, 32, 16, 16, jnp.float32, 1e-5)
    check(1, "fused_bf16", 2, 32, 16, 16, jnp.bfloat16, 5e-2)
    # Forced tiled two-pass fallback: multi-tile accumulation + 2-way outer split.
    check(2, "tiled_f32", 2, 32, 32, 32, jnp.float32, 1e-5,
          force_two_pass=True, max_tile_bytes=32 * 1024)
    # Tiled path with H*W not a multiple of 128 (zero-padded lanes).
    check(3, "tiled_pad_f32", 1, 16, 10, 18, jnp.float32, 1e-5,
          force_two_pass=True, max_tile_bytes=8 * 1024)

    print("KERNEL_OK")
</pallas_src>

<mosaic_0001>
module attributes {stable_mosaic.version = 11 : i64} {
  func.func @_fused_kernel(%arg0: i32, %arg1: memref<1x32x256xf32, #tpu.memory_space<vmem>>, %arg2: memref<1x32x256xf32, #tpu.memory_space<vmem>>, %arg3: memref<2x32x5xf32, #tpu.memory_space<vmem>>, %arg4: memref<2x2xf32, #tpu.memory_space<vmem>>, %arg5: memref<1x32x256xf32, #tpu.memory_space<vmem>>) attributes {dimension_semantics = [#tpu.dimension_semantics<parallel>], iteration_bounds = array<i64: 2>, scalar_prefetch = 0 : i64, scratch_operands = 0 : i64, tpu.core_type = #tpu.core_type<tc>, window_params = [{transform_indices = @transform_0, window_bounds = array<i64: 1, 32, 256>}, {transform_indices = @transform_1, window_bounds = array<i64: 1, 32, 256>}, {pipeline_mode = #tpu.pipeline_mode<synchronous>, transform_indices = @transform_2, window_bounds = array<i64: 2, 32, 5>}, {pipeline_mode = #tpu.pipeline_mode<synchronous>, transform_indices = @transform_3, window_bounds = array<i64: 2, 2>}, {transform_indices = @transform_4, window_bounds = array<i64: 1, 32, 256>}]} {
    %c0 = arith.constant 0 : index
    %c0_0 = arith.constant 0 : index
    %c0_1 = arith.constant 0 : index
    %0 = vector.load %arg1[%c0, %c0_0, %c0_1] : memref<1x32x256xf32, #tpu.memory_space<vmem>>, vector<1x32x256xf32>
    %1 = vector.shape_cast %0 : vector<1x32x256xf32> to vector<32x256xf32>
    %c0_2 = arith.constant 0 : index
    %c0_3 = arith.constant 0 : index
    %c0_4 = arith.constant 0 : index
    %2 = vector.load %arg2[%c0_2, %c0_3, %c0_4] : memref<1x32x256xf32, #tpu.memory_space<vmem>>, vector<1x32x256xf32>
    %3 = vector.shape_cast %2 : vector<1x32x256xf32> to vector<32x256xf32>
    %cst = arith.constant dense<0.000000e+00> : vector<32xf32>
    %4 = vector.multi_reduction <add>, %1, %cst [1] : vector<32x256xf32> to vector<32xf32>
    %5 = vector.shape_cast %4 : vector<32xf32> to vector<32x1xf32>
    %cst_5 = arith.constant 3.906250e-03 : f32
    %6 = vector.broadcast %cst_5 : f32 to vector<32x1xf32>
    %7 = arith.mulf %5, %6 : vector<32x1xf32>
    %cst_6 = arith.constant dense<0.000000e+00> : vector<32xf32>
    %8 = vector.multi_reduction <add>, %3, %cst_6 [1] : vector<32x256xf32> to vector<32xf32>
    %9 = vector.shape_cast %8 : vector<32xf32> to vector<32x1xf32>
    %cst_7 = arith.constant 3.906250e-03 : f32
    %10 = vector.broadcast %cst_7 : f32 to vector<32x1xf32>
    %11 = arith.mulf %9, %10 : vector<32x1xf32>
    %c0_8 = arith.constant 0 : index
    %c0_9 = arith.constant 0 : index
    %c0_10 = arith.constant 0 : index
    %12 = vector.load %arg3[%c0_8, %c0_9, %c0_10] : memref<2x32x5xf32, #tpu.memory_space<vmem>>, vector<1x32x5xf32>
    %13 = vector.shape_cast %12 : vector<1x32x5xf32> to vector<32x5xf32>
    %c0_11 = arith.constant 0 : index
    %c0_12 = arith.constant 0 : index
    %14 = vector.load %arg4[%c0_11, %c0_12] : memref<2x2xf32, #tpu.memory_space<vmem>>, vector<1x2xf32>
    %15 = vector.extract_strided_slice %13 {offsets = [0, 0], sizes = [32, 2], strides = [1, 1]} : vector<32x5xf32> to vector<32x2xf32>
    %16 = vector.extract_strided_slice %13 {offsets = [0, 2], sizes = [32, 2], strides = [1, 1]} : vector<32x5xf32> to vector<32x2xf32>
    %17 = vector.extract_strided_slice %13 {offsets = [0, 4], sizes = [32, 1], strides = [1, 1]} : vector<32x5xf32> to vector<32x1xf32>
    %18 = vector.broadcast %7 : vector<32x1xf32> to vector<32x2xf32>
    %19 = arith.mulf %15, %18 : vector<32x2xf32>
    %cst_13 = arith.constant dense<0.000000e+00> : vector<2xf32>
    %20 = vector.multi_reduction <add>, %19, %cst_13 [0] : vector<32x2xf32> to vector<2xf32>
    %21 = vector.shape_cast %20 : vector<2xf32> to vector<1x2xf32>
    %22 = arith.addf %21, %14 : vector<1x2xf32>
    %cst_14 = arith.constant 0.000000e+00 : f32
    %23 = vector.broadcast %cst_14 : f32 to vector<1x2xf32>
    %24 = arith.maximumf %22, %23 : vector<1x2xf32>
    %25 = vector.broadcast %24 : vector<1x2xf32> to vector<32x2xf32>
    %26 = arith.mulf %16, %25 : vector<32x2xf32>
    %cst_15 = arith.constant dense<0.000000e+00> : vector<32xf32>
    %27 = vector.multi_reduction <add>, %26, %cst_15 [1] : vector<32x2xf32> to vector<32xf32>
    %28 = vector.shape_cast %27 : vector<32xf32> to vector<32x1xf32>
    %29 = arith.addf %28, %17 : vector<32x1xf32>
    %30 = arith.negf %29 : vector<32x1xf32>
    %31 = math.exp %30 : vector<32x1xf32>
    %cst_16 = arith.constant 1.000000e+00 : f32
    %32 = vector.broadcast %cst_16 : f32 to vector<32x1xf32>
    %33 = arith.addf %32, %31 : vector<32x1xf32>
    %34 = arith.divf %32, %33 : vector<32x1xf32>
    %c1 = arith.constant 1 : index
    %c0_17 = arith.constant 0 : index
    %c0_18 = arith.constant 0 : index
    %35 = vector.load %arg3[%c1, %c0_17, %c0_18] : memref<2x32x5xf32, #tpu.memory_space<vmem>>, vector<1x32x5xf32>
    %36 = vector.shape_cast %35 : vector<1x32x5xf32> to vector<32x5xf32>
    %c1_19 = arith.constant 1 : index
    %c0_20 = arith.constant 0 : index
    %37 = vector.load %arg4[%c1_19, %c0_20] : memref<2x2xf32, #tpu.memory_space<vmem>>, vector<1x2xf32>
    %38 = vector.extract_strided_slice %36 {offsets = [0, 0], sizes = [32, 2], strides = [1, 1]} : vector<32x5xf32> to vector<32x2xf32>
    %39 = vector.extract_strided_slice %36 {offsets = [0, 2], sizes = [32, 2], strides = [1, 1]} : vector<32x5xf32> to vector<32x2xf32>
    %40 = vector.extract_strided_slice %36 {offsets = [0, 4], sizes = [32, 1], strides = [1, 1]} : vector<32x5xf32> to vector<32x1xf32>
    %41 = vector.broadcast %11 : vector<32x1xf32> to vector<32x2xf32>
    %42 = arith.mulf %38, %41 : vector<32x2xf32>
    %cst_21 = arith.constant dense<0.000000e+00> : vector<2xf32>
    %43 = vector.multi_reduction <add>, %42, %cst_21 [0] : vector<32x2xf32> to vector<2xf32>
    %44 = vector.shape_cast %43 : vector<2xf32> to vector<1x2xf32>
    %45 = arith.addf %44, %37 : vector<1x2xf32>
    %cst_22 = arith.constant 0.000000e+00 : f32
    %46 = vector.broadcast %cst_22 : f32 to vector<1x2xf32>
    %47 = arith.maximumf %45, %46 : vector<1x2xf32>
    %48 = vector.broadcast %47 : vector<1x2xf32> to vector<32x2xf32>
    %49 = arith.mulf %39, %48 : vector<32x2xf32>
    %cst_23 = arith.constant dense<0.000000e+00> : vector<32xf32>
    %50 = vector.multi_reduction <add>, %49, %cst_23 [1] : vector<32x2xf32> to vector<32xf32>
    %51 = vector.shape_cast %50 : vector<32xf32> to vector<32x1xf32>
    %52 = arith.addf %51, %40 : vector<32x1xf32>
    %53 = arith.negf %52 : vector<32x1xf32>
    %54 = math.exp %53 : vector<32x1xf32>
    %cst_24 = arith.constant 1.000000e+00 : f32
    %55 = vector.broadcast %cst_24 : f32 to vector<32x1xf32>
    %56 = arith.addf %55, %54 : vector<32x1xf32>
    %57 = arith.divf %55, %56 : vector<32x1xf32>
    %58 = vector.broadcast %34 : vector<32x1xf32> to vector<32x256xf32>
    %59 = arith.mulf %1, %58 : vector<32x256xf32>
    %60 = vector.broadcast %57 : vector<32x1xf32> to vector<32x256xf32>
    %61 = arith.mulf %3, %60 : vector<32x256xf32>
    %62 = arith.addf %59, %61 : vector<32x256xf32>
    %c0_25 = arith.constant 0 : index
    %c0_26 = arith.constant 0 : index
    %c0_27 = arith.constant 0 : index
    %63 = vector.load %arg5[%c0_25, %c0_26, %c0_27] : memref<1x32x256xf32, #tpu.memory_space<vmem>>, vector<1x32x256xf32>
    %64 = vector.shape_cast %63 : vector<1x32x256xf32> to vector<32x256xf32>
    %65 = vector.shape_cast %62 : vector<32x256xf32> to vector<1x32x256xf32>
    tpu.vector_store %arg5[%c0_25, %c0_26, %c0_27], %65 {strides = array<i32>} : memref<1x32x256xf32, #tpu.memory_space<vmem>>, vector<1x32x256xf32>,
    return
  }
  func.func @transform_0(%arg0: i32) -> (i32, i32, i32) {
    %c0_i32 = arith.constant 0 : i32
    %c0_i32_0 = arith.constant 0 : i32
    %c0_i32_1 = arith.constant 0 : i32
    return %arg0, %c0_i32, %c0_i32_0 : i32, i32, i32
  }
  func.func @transform_1(%arg0: i32) -> (i32, i32, i32) {
    %c0_i32 = arith.constant 0 : i32
    %c0_i32_0 = arith.constant 0 : i32
    %c0_i32_1 = arith.constant 0 : i32
    return %arg0, %c0_i32, %c0_i32_0 : i32, i32, i32
  }
  func.func @transform_2(%arg0: i32) -> (i32, i32, i32) {
    %c0_i32 = arith.constant 0 : i32
    %c0_i32_0 = arith.constant 0 : i32
    %c0_i32_1 = arith.constant 0 : i32
    %c0_i32_2 = arith.constant 0 : i32
    return %c0_i32, %c0_i32_0, %c0_i32_1 : i32, i32, i32
  }
  func.func @transform_3(%arg0: i32) -> (i32, i32) {
    %c0_i32 = arith.constant 0 : i32
    %c0_i32_0 = arith.constant 0 : i32
    %c0_i32_1 = arith.constant 0 : i32
    return %c0_i32, %c0_i32_0 : i32, i32
  }
  func.func @transform_4(%arg0: i32) -> (i32, i32, i32) {
    %c0_i32 = arith.constant 0 : i32
    %c0_i32_0 = arith.constant 0 : i32
    %c0_i32_1 = arith.constant 0 : i32
    return %arg0, %c0_i32, %c0_i32_0 : i32, i32, i32
  }
}

</mosaic_0001>

<llo_original>
// kernel: tpu_custom_call.1
$region0: #{tpu_custom_call.1}
  #allocation0 [shape = 'u32[]', space=smem, size = 0x4, offset = 0x4, fixed_abs, tag = 'smem constant byte address 0x4 - core index']
  #allocation1 [shape = 'u32[144,128]{1,0:T(1,128)}', space=vmem, size = 0x12000, scoped, tag = 'internal scratch']
  %s0 = inlined_call_operand.hbm [shape: f32[2,32,256], index: 0, kind: input, shape index: {}]
  %s1 = inlined_call_operand.hbm [shape: f32[2,32,256], index: 1, kind: input, shape index: {}]
  %s2 = inlined_call_operand.vmem [shape: f32[2,32,5], index: 2, kind: input, shape index: {}]
  %s3 = inlined_call_operand.vmem [shape: f32[2,2], index: 3, kind: input, shape index: {}]
  %s4 = inlined_call_operand.hbm [shape: f32[2,32,256], index: 4, kind: output, shape index: {}]
  %s5 = sld [smem:[#allocation0]]
  $region57: #{tpu_custom_call.1} parent=0
    _
  %s7 = ssub.s32 1, %s5
  %s8 = scalar_select 0, %s7, %s5
  $region1: #{tpu_custom_call.1} parent=0
    #allocation2 [shape = 'u8[65536]{0}', space=vmem, size = 0x10000, scoped, tag = 'input window, operand 0']
    #allocation3 [shape = 's32[2]{0}', space=sflag, size = 0x8, scoped, tag = 'scoped memory for tpu_custom_call.1']
    #allocation4 [shape = 's32[2]{0}', space=sflag, size = 0x8, scoped, tag = 'scoped memory for tpu_custom_call.1']
    #allocation5 [shape = 'u8[65536]{0}', space=vmem, size = 0x10000, scoped, tag = 'input window, operand 1']
    #allocation6 [shape = 's32[2]{0}', space=sflag, size = 0x8, scoped, tag = 'scoped memory for tpu_custom_call.1']
    #allocation7 [shape = 'u8[65536]{0}', space=vmem, size = 0x10000, scoped, tag = 'output window, operand 0']
    %9 = vsyncpa [#allocation3], 0
    %s10 = scalar_lea.sflag [#allocation3], 1
    %11 = vsyncpa %s10, 0
    %12 = vsyncpa [#allocation6], 0
    %s13 = scalar_lea.sflag [#allocation6], 1
    %14 = vsyncpa %s13, 0
    %15 = vsyncpa [#allocation4], 0
    %s16 = scalar_lea.sflag [#allocation4], 1
    %17 = vsyncpa %s16, 0
    loop: start=0, step=1, limit=4
    $region2: #{tpu_custom_call.1} parent=1 // loop_pre_header
      _
    $region3: #{tpu_custom_call.1} parent=1 // loop_header
      %s19 = sphi 0, %s23
      %p20 = scmp.ge.s32.totalorder %s19, 4
      %s29 = sphi 0, %s31
      %s32 = sphi 0, %s29
      %s33 = sphi 0, %s32
      %s49 = sphi 0, %s33
      %s55 = sphi 0, %s57
      %s58 = sphi 0, %s55
      %s59 = sphi 0, %s58
      %s75 = sphi 0, %s59
      %s79 = sphi 0, %s79
      %s81 = sphi 0, %s79
      %s82 = sphi 0, %s81
      %s96 = sphi 0, %s82
      %s100 = sphi 0, %s100
      %s102 = sphi 0, %s100
      %s103 = sphi 0, %s102
      %s117 = sphi 0, %s103
      %s123 = sphi 0, %s125
      %s126 = sphi 0, %s123
      %s127 = sphi 0, %s126
      %s143 = sphi 0, %s127
    $region4: #{tpu_custom_call.1} parent=1 // loop_header_branch
      %22 = sbr.rel (%p20) target = $region8
    $region5: #{tpu_custom_call.1} parent=1 // loop_body
      %s24 = ssub.s32 %s19, 1
      %s25 = ssub.s32 %s19, 2
      %s26 = sadd.s32 %s19, 1
      %s27 = ssub.s32 %s19, %s26
      %p28 = scmp.eq.s32.totalorder %s27, 0
      %s30 = sadd.s32 %s29, 1
      %s31 = scalar_select %p28, %s29, %s30
      %p34 = pneg %p28
      %p35 = scmp.eq.s32.totalorder %s19, 1
      %p36 = por %p34, %p35
      %p37 = scmp.ne.s32.totalorder %s29, %s32
      %p38 = scmp.eq.s32.totalorder %s19, 0
      %p39 = por %p37, %p38
      %p40 = scmp.ne.s32.totalorder %s29, %s32
      %p41 = scmp.eq.s32.totalorder %s24, 1
      %p42 = por %p40, %p41
      %p43 = scmp.ne.s32.totalorder %s32, %s33
      %p44 = scmp.eq.s32.totalorder %s24, 0
      %p45 = por %p43, %p44
      %p46 = scmp.ne.s32.totalorder %s32, %s33
      %p47 = scmp.eq.s32.totalorder %s25, 1
      %p48 = por %p46, %p47
      %p50 = scmp.ne.s32.totalorder %s33, %s49
      %p51 = scmp.eq.s32.totalorder %s25, 0
      %p52 = por %p50, %p51
      %s53 = ssub.s32 %s19, %s26
      %p54 = scmp.eq.s32.totalorder %s53, 0
      %s56 = sadd.s32 %s55, 1
      %s57 = scalar_select %p54, %s55, %s56
      %p60 = pneg %p54
      %p61 = scmp.eq.s32.totalorder %s19, 1
      %p62 = por %p60, %p61
      %p63 = scmp.ne.s32.totalorder %s55, %s58
      %p64 = scmp.eq.s32.totalorder %s19, 0
      %p65 = por %p63, %p64
      %p66 = scmp.ne.s32.totalorder %s55, %s58
      %p67 = scmp.eq.s32.totalorder %s24, 1
      %p68 = por %p66, %p67
      %p69 = scmp.ne.s32.totalorder %s58, %s59
      %p70 = scmp.eq.s32.totalorder %s24, 0
      %p71 = por %p69, %p70
      %p72 = scmp.ne.s32.totalorder %s58, %s59
      %p73 = scmp.eq.s32.totalorder %s25, 1
      %p74 = por %p72, %p73
      %p76 = scmp.ne.s32.totalorder %s59, %s75
      %p77 = scmp.eq.s32.totalorder %s25, 0
      %p78 = por %p76, %p77
      %s80 = sadd.s32 %s79, 1
      %p83 = scmp.eq.s32.totalorder %s19, 1
      %p84 = scmp.ne.s32.totalorder %s79, %s81
      %p85 = scmp.eq.s32.totalorder %s19, 0
      %p86 = por %p84, %p85
      %p87 = scmp.ne.s32.totalorder %s79, %s81
      %p88 = scmp.eq.s32.totalorder %s24, 1
      %p89 = por %p87, %p88
      %p90 = scmp.ne.s32.totalorder %s81, %s82
      %p91 = scmp.eq.s32.totalorder %s24, 0
      %p92 = por %p90, %p91
      %p93 = scmp.ne.s32.totalorder %s81, %s82
      %p94 = scmp.eq.s32.totalorder %s25, 1
      %p95 = por %p93, %p94
      %p97 = scmp.ne.s32.totalorder %s82, %s96
      %p98 = scmp.eq.s32.totalorder %s25, 0
      %p99 = por %p97, %p98
      %s101 = sadd.s32 %s100, 1
      %p104 = scmp.eq.s32.totalorder %s19, 1
      %p105 = scmp.ne.s32.totalorder %s100, %s102
      %p106 = scmp.eq.s32.totalorder %s19, 0
      %p107 = por %p105, %p106
      %p108 = scmp.ne.s32.totalorder %s100, %s102
      %p109 = scmp.eq.s32.totalorder %s24, 1
      %p110 = por %p108, %p109
      %p111 = scmp.ne.s32.totalorder %s102, %s103
      %p112 = scmp.eq.s32.totalorder %s24, 0
      %p113 = por %p111, %p112
      %p114 = scmp.ne.s32.totalorder %s102, %s103
      %p115 = scmp.eq.s32.totalorder %s25, 1
      %p116 = por %p114, %p115
      %p118 = scmp.ne.s32.totalorder %s103, %s117
      %p119 = scmp.eq.s32.totalorder %s25, 0
      %p120 = por %p118, %p119
      %s121 = ssub.s32 %s19, %s26
      %p122 = scmp.eq.s32.totalorder %s121, 0
      %s124 = sadd.s32 %s123, 1
      %s125 = scalar_select %p122, %s123, %s124
      %p128 = pneg %p122
      %p129 = scmp.eq.s32.totalorder %s19, 1
      %p130 = por %p128, %p129
      %p131 = scmp.ne.s32.totalorder %s123, %s126
      %p132 = scmp.eq.s32.totalorder %s19, 0
      %p133 = por %p131, %p132
      %p134 = scmp.ne.s32.totalorder %s123, %s126
      %p135 = scmp.eq.s32.totalorder %s24, 1
      %p136 = por %p134, %p135
      %p137 = scmp.ne.s32.totalorder %s126, %s127
      %p138 = scmp.eq.s32.totalorder %s24, 0
      %p139 = por %p137, %p138
      %p140 = scmp.ne.s32.totalorder %s126, %s127
      %p141 = scmp.eq.s32.totalorder %s25, 1
      %p142 = por %p140, %p141
      %p144 = scmp.ne.s32.totalorder %s127, %s143
      %p145 = scmp.eq.s32.totalorder %s25, 0
      %p146 = por %p144, %p145
      %p147 = scmp.le.s32.totalorder 1, %s19
      %p148 = scmp.lt.s32.totalorder %s19, 3
      %p149 = pnand %p147, %p148
      %p150 = pneg %p149
      // Predicated region
      $region9: #{tpu_custom_call.1} parent=5 // pred_check
        _
      $region10: #{tpu_custom_call.1} parent=5 // pred_check_branch
        %152 = sbr.rel (%p149) target = $region12
      $region11: #{tpu_custom_call.1} parent=5 // pred_region
        %s153 = ssub.s32 %s19, 1
        // Predicated region
        $region13: #{tpu_custom_call.1} parent=11 // pred_check
          %p154 = pneg %p92
        $region14: #{tpu_custom_call.1} parent=11 // pred_check_branch
          %156 = sbr.rel (%p154) target = $region16
        $region15: #{tpu_custom_call.1} parent=11 // pred_region
          _
        $region16: #{tpu_custom_call.1} parent=11 // pred_fallthru
          _
        // Predicated region
        $region17: #{tpu_custom_call.1} parent=11 // pred_check
          %p157 = pneg %p113
        $region18: #{tpu_custom_call.1} parent=11 // pred_check_branch
          %159 = sbr.rel (%p157) target = $region20
        $region19: #{tpu_custom_call.1} parent=11 // pred_region
          _
        $region20: #{tpu_custom_call.1} parent=11 // pred_fallthru
          _
      $region12: #{tpu_custom_call.1} parent=5 // pred_fallthru
        _
      %p160 = scmp.lt.s32.totalorder %s19, 2
      // Predicated region
      $region21: #{tpu_custom_call.1} parent=5 // pred_check
        %p161 = pneg %p160
      $region22: #{tpu_custom_call.1} parent=5 // pred_check_branch
        %163 = sbr.rel (%p161) target = $region24
      $region23: #{tpu_custom_call.1} parent=5 // pred_region
        // Predicated region
        $region25: #{tpu_custom_call.1} parent=23 // pred_check
          %p164 = pneg %p39
        $region26: #{tpu_custom_call.1} parent=23 // pred_check_branch
          %166 = sbr.rel (%p164) target = $region28
        $region27: #{tpu_custom_call.1} parent=23 // pred_region
          %s167 = sand.u32 %s29, 1
          %s168 = scalar_lea.sflag [#allocation3], %s167
          %s169 = sand.u32 %s29, 1
          %s170 = smul.addr %s169, 64
          %s171 = scalar_lea.vmem [#allocation2], %s170
          %s173 = ssub.s32 1024, 1024
          %174 = vsyncadd %s168, %s173
          %s175 = smul.addr %s19, 8
          %s176 = smul.addr %s175, 128
          %s177 = scalar_lea.hbm %s0, %s176
          %s178 = sshll.u32 %s171, 4
          %s179 = int_to_ptr.vmem [resolvable:$true] %s178
          %184 = dma.hbm_to_vmem [thread:$0]  %s177, 1024, %s179, %s168, 256, 256, 16
        $region28: #{tpu_custom_call.1} parent=23 // pred_fallthru
          _
        // Predicated region
        $region29: #{tpu_custom_call.1} parent=23 // pred_check
          %p185 = pneg %p65
        $region30: #{tpu_custom_call.1} parent=23 // pred_check_branch
          %187 = sbr.rel (%p185) target = $region32
        $region31: #{tpu_custom_call.1} parent=23 // pred_region
          %s188 = sand.u32 %s55, 1
          %s189 = scalar_lea.sflag [#allocation6], %s188
          %s190 = sand.u32 %s55, 1
          %s191 = smul.addr %s190, 64
          %s192 = scalar_lea.vmem [#allocation5], %s191
          %s194 = ssub.s32 1024, 1024
          %195 = vsyncadd %s189, %s194
          %s196 = smul.addr %s19, 8
          %s197 = smul.addr %s196, 128
          %s198 = scalar_lea.hbm %s1, %s197
          %s199 = sshll.u32 %s192, 4
          %s200 = int_to_ptr.vmem [resolvable:$true] %s199
          %205 = dma.hbm_to_vmem [thread:$0]  %s198, 1024, %s200, %s189, 256, 256, 16
        $region32: #{tpu_custom_call.1} parent=23 // pred_fallthru
          _
      $region24: #{tpu_custom_call.1} parent=5 // pred_fallthru
        _
      %p206 = scmp.le.s32.totalorder 1, %s19
      %p207 = scmp.lt.s32.totalorder %s19, 3
      %p208 = pnand %p206, %p207
      %p209 = pneg %p208
      // Predicated region
      $region33: #{tpu_custom_call.1} parent=5 // pred_check
        _
      $region34: #{tpu_custom_call.1} parent=5 // pred_check_branch
        %211 = sbr.rel (%p208) target = $region36
      $region35: #{tpu_custom_call.1} parent=5 // pred_region
        %s212 = ssub.s32 %s19, 1
        %s213 = sand.u32 %s32, 1
        %s214 = scalar_lea.sflag [#allocation3], %s213
        %s215 = sand.u32 %s32, 1
        %s216 = smul.addr %s215, 64
        %s217 = scalar_lea.vmem [#allocation2], %s216
        // Predicated region
        $region37: #{tpu_custom_call.1} parent=35 // pred_check
          %p218 = pneg %p45
        $region38: #{tpu_custom_call.1} parent=35 // pred_check_branch
          %220 = sbr.rel (%p218) target = $region40
        $region39: #{tpu_custom_call.1} parent=35 // pred_region
          %221 = dma.done %s214, 1024
        $region40: #{tpu_custom_call.1} parent=35 // pred_fallthru
          _
        %s222 = sand.u32 %s58, 1
        %s223 = scalar_lea.sflag [#allocation6], %s222
        %s224 = sand.u32 %s58, 1
        %s225 = smul.addr %s224, 64
        %s226 = scalar_lea.vmem [#allocation5], %s225
        // Predicated region
        $region41: #{tpu_custom_call.1} parent=35 // pred_check
          %p227 = pneg %p71
        $region42: #{tpu_custom_call.1} parent=35 // pred_check_branch
          %229 = sbr.rel (%p227) target = $region44
        $region43: #{tpu_custom_call.1} parent=35 // pred_region
          %230 = dma.done %s223, 1024
        $region44: #{tpu_custom_call.1} parent=35 // pred_fallthru
          _
        %s231 = sand.u32 %s32, 1
        %s232 = scalar_lea.sflag [#allocation3], %s231
        %s233 = sand.u32 %s32, 1
        %s234 = smul.addr %s233, 64
        %s235 = scalar_lea.vmem [#allocation2], %s234
        %p236 = pneg %p45
        %p237 = pneg %p42
        %s238 = sand.u32 %s58, 1
        %s239 = scalar_lea.sflag [#allocation6], %s238
        %s240 = sand.u32 %s58, 1
        %s241 = smul.addr %s240, 64
        %s242 = scalar_lea.vmem [#allocation5], %s241
        %p243 = pneg %p71
        %p244 = pneg %p68
        %p245 = pneg %p92
        %p246 = pneg %p89
        %p247 = pneg %p113
        %p248 = pneg %p110
        %p249 = pneg %p139
        %p250 = pneg %p136
        %s251 = sand.u32 %s126, 1
        %s252 = scalar_lea.sflag [#allocation4], %s251
        %s253 = sand.u32 %s126, 1
        %s254 = smul.addr %s253, 64
        %s255 = scalar_lea.vmem [#allocation7], %s254
        %v256 = vld [vmem:[%s217] sm:$0xff]
        %v257 = vld [vmem:[%s217 + $0x8] sm:$0xff]
        %v258 = vld [vmem:[%s217 + $0x10] sm:$0xff]
        %v259 = vld [vmem:[%s217 + $0x18] sm:$0xff]
        %v260 = vld [vmem:[%s217 + $0x20] sm:$0xff]
        %v261 = vld [vmem:[%s217 + $0x28] sm:$0xff]
        %v262 = vld [vmem:[%s217 + $0x30] sm:$0xff]
        %v263 = vld [vmem:[%s217 + $0x38] sm:$0xff]
        %v264 = vld [vmem:[%s226] sm:$0xff]
        %v265 = vld [vmem:[%s226 + $0x8] sm:$0xff]
        %v266 = vld [vmem:[%s226 + $0x10] sm:$0xff]
        %v267 = vld [vmem:[%s226 + $0x18] sm:$0xff]
        %v268 = vld [vmem:[%s226 + $0x20] sm:$0xff]
        %v269 = vld [vmem:[%s226 + $0x28] sm:$0xff]
        %v270 = vld [vmem:[%s226 + $0x30] sm:$0xff]
        %v271 = vld [vmem:[%s226 + $0x38] sm:$0xff]
        %v272 = vadd.f32 %v256, %v257
        %273 = vadd.xlane.f32.xlu0 %v272
        %v274 = vpop.xlane.xlu0 %273
        %v275 = vadd.f32 %v258, %v259
        %276 = vadd.xlane.f32.xlu0 %v275
        %v277 = vpop.xlane.xlu0 %276
        %v278 = vadd.f32 %v260, %v261
        %279 = vadd.xlane.f32.xlu0 %v278
        %v280 = vpop.xlane.xlu0 %279
        %v281 = vadd.f32 %v262, %v263
        %282 = vadd.xlane.f32.xlu0 %v281
        %v283 = vpop.xlane.xlu0 %282
        %v284 = vmul.f32 %v274, 0.00390625
        %v285 = vmul.f32 %v277, 0.00390625
        %v286 = vmul.f32 %v280, 0.00390625
        %v287 = vmul.f32 %v283, 0.00390625
        %v288 = vadd.f32 %v264, %v265
        %289 = vadd.xlane.f32.xlu0 %v288
        %v290 = vpop.xlane.xlu0 %289
        %v291 = vadd.f32 %v266, %v267
        %292 = vadd.xlane.f32.xlu0 %v291
        %v293 = vpop.xlane.xlu0 %292
        %v294 = vadd.f32 %v268, %v269
        %295 = vadd.xlane.f32.xlu0 %v294
        %v296 = vpop.xlane.xlu0 %295
        %v297 = vadd.f32 %v270, %v271
        %298 = vadd.xlane.f32.xlu0 %v297
        %v299 = vpop.xlane.xlu0 %298
        %v300 = vmul.f32 %v290, 0.00390625
        %v301 = vmul.f32 %v293, 0.00390625
        %v302 = vmul.f32 %v296, 0.00390625
        %v303 = vmul.f32 %v299, 0.00390625
        %v304 = vld [vmem:[%s2] sm:$0xff]
        %v305 = vld [vmem:[%s2 + $0x8] sm:$0xff]
        %v306 = vld [vmem:[%s2 + $0x10] sm:$0xff]
        %v307 = vld [vmem:[%s2 + $0x18] sm:$0xff]
        %v308 = vld [vmem:[%s3] sm:$0x1]
        %v309 = vmul.f32 %v304, %v284
        %v310 = vmul.f32 %v305, %v285
        %v311 = vmul.f32 %v306, %v286
        %v312 = vmul.f32 %v307, %v287
        %vm313 = vcmask 15360
        %v314 = vsel %vm313, %v309, 0.0
        %v315 = vsel %vm313, %v310, 0.0
        %v316 = vadd.f32 %v314, %v315
        %v317 = vsel %vm313, %v311, 0.0
        %v318 = vadd.f32 %v316, %v317
        %v319 = vsel %vm313, %v312, 0.0
        %v320 = vadd.f32 %v318, %v319
        %v321 = vrot.slane %v320, 4
        %v322 = vadd.f32 %v320, %v321
        %v323 = vrot.slane %v322, 2
        %v324 = vadd.f32 %v322, %v323
        %v325 = vrot.slane %v324, 1
        %v326 = vadd.f32 %v324, %v325
        %v327 = vadd.f32 %v326, %v308
        %v328 = vmax.f32 %v327, 0.0
        %v329 = vlaneseq
        %v330 = vshrl.u32 %v329, 7
        %v331 = vsub.s32 0, %v330
        %v332 = vrot.slane %v328, %v331
        %334 = vrot.lane.b32.xlu0 %v332, 2
        %v335 = vpop.permute.xlu0 %334
        %v337 = vmul.f32 %v304, %v335
        %v338 = vmul.f32 %v305, %v335
        %v339 = vmul.f32 %v306, %v335
        %v340 = vmul.f32 %v307, %v335
        %345 = vrot.lane.b32.xlu0 %v337, 126
        %v346 = vpop.permute.xlu0 %345
        %347 = vrot.lane.b32.xlu0 %v338, 126
        %v348 = vpop.permute.xlu0 %347
        %349 = vrot.lane.b32.xlu0 %v339, 126
        %v350 = vpop.permute.xlu0 %349
        %351 = vrot.lane.b32.xlu0 %v340, 126
        %v352 = vpop.permute.xlu0 %351
        %v357 = vsel %vm313, %v346, 0.0
        %358 = vadd.xlane.f32.xlu0 %v357
        %v359 = vpop.xlane.xlu0 %358
        %v360 = vsel %vm313, %v348, 0.0
        %361 = vadd.xlane.f32.xlu0 %v360
        %v362 = vpop.xlane.xlu0 %361
        %v363 = vsel %vm313, %v350, 0.0
        %364 = vadd.xlane.f32.xlu0 %v363
        %v365 = vpop.xlane.xlu0 %364
        %v366 = vsel %vm313, %v352, 0.0
        %367 = vadd.xlane.f32.xlu0 %v366
        %v368 = vpop.xlane.xlu0 %367
        %v369 = vadd.f32 %v359, %v304
        %v370 = vadd.f32 %v362, %v305
        %v371 = vadd.f32 %v365, %v306
        %v372 = vadd.f32 %v368, %v307
        %v373 = vxor.u32 %v369, 2147483648
        %v374 = vxor.u32 %v370, 2147483648
        %v375 = vxor.u32 %v371, 2147483648
        %v376 = vxor.u32 %v372, 2147483648
        %v377 = vmul.f32 %v373, 1.442695
        %v378 = vpow.pop %v377
        %v379 = vmul.f32 %v374, 1.442695
        %v380 = vpow.pop %v379
        %v381 = vmul.f32 %v375, 1.442695
        %v382 = vpow.pop %v381
        %v383 = vmul.f32 %v376, 1.442695
        %v384 = vpow.pop %v383
        %v385 = vadd.f32 %v378, 1.0
        %v386 = vadd.f32 %v380, 1.0
        %v387 = vadd.f32 %v382, 1.0
        %v388 = vadd.f32 %v384, 1.0
        %v389 = vrcp.pop %v385
        %v390 = vmul.f32 1.0, %v389
        %v391 = vrcp.pop %v386
        %v392 = vmul.f32 1.0, %v391
        %v393 = vrcp.pop %v387
        %v394 = vmul.f32 1.0, %v393
        %v395 = vrcp.pop %v388
        %v396 = vmul.f32 1.0, %v395
        %s397 = scalar_lea.vmem %s2, 32
        %v398 = vld [vmem:[%s397] sm:$0xff]
        %v399 = vld [vmem:[%s397 + $0x8] sm:$0xff]
        %v400 = vld [vmem:[%s397 + $0x10] sm:$0xff]
        %v401 = vld [vmem:[%s397 + $0x18] sm:$0xff]
        %v402 = vld [vmem:[%s3 + $0x1] sm:$0x1]
        %v403 = vmul.f32 %v398, %v300
        %v404 = vmul.f32 %v399, %v301
        %v405 = vmul.f32 %v400, %v302
        %v406 = vmul.f32 %v401, %v303
        %v407 = vsel %vm313, %v403, 0.0
        %v408 = vsel %vm313, %v404, 0.0
        %v409 = vadd.f32 %v407, %v408
        %v410 = vsel %vm313, %v405, 0.0
        %v411 = vadd.f32 %v409, %v410
        %v412 = vsel %vm313, %v406, 0.0
        %v413 = vadd.f32 %v411, %v412
        %v414 = vrot.slane %v413, 4
        %v415 = vadd.f32 %v413, %v414
        %v416 = vrot.slane %v415, 2
        %v417 = vadd.f32 %v415, %v416
        %v418 = vrot.slane %v417, 1
        %v419 = vadd.f32 %v417, %v418
        %v420 = vadd.f32 %v419, %v402
        %v421 = vmax.f32 %v420, 0.0
        %v422 = vlaneseq
        %v423 = vshrl.u32 %v422, 7
        %v424 = vsub.s32 0, %v423
        %v425 = vrot.slane %v421, %v424
        %427 = vrot.lane.b32.xlu0 %v425, 2
        %v428 = vpop.permute.xlu0 %427
        %v430 = vmul.f32 %v398, %v428
        %v431 = vmul.f32 %v399, %v428
        %v432 = vmul.f32 %v400, %v428
        %v433 = vmul.f32 %v401, %v428
        %438 = vrot.lane.b32.xlu0 %v430, 126
        %v439 = vpop.permute.xlu0 %438
        %440 = vrot.lane.b32.xlu0 %v431, 126
        %v441 = vpop.permute.xlu0 %440
        %442 = vrot.lane.b32.xlu0 %v432, 126
        %v443 = vpop.permute.xlu0 %442
        %444 = vrot.lane.b32.xlu0 %v433, 126
        %v445 = vpop.permute.xlu0 %444
        %v450 = vsel %vm313, %v439, 0.0
        %451 = vadd.xlane.f32.xlu0 %v450
        %v452 = vpop.xlane.xlu0 %451
        %v453 = vsel %vm313, %v441, 0.0
        %454 = vadd.xlane.f32.xlu0 %v453
        %v455 = vpop.xlane.xlu0 %454
        %v456 = vsel %vm313, %v443, 0.0
        %457 = vadd.xlane.f32.xlu0 %v456
        %v458 = vpop.xlane.xlu0 %457
        %v459 = vsel %vm313, %v445, 0.0
        %460 = vadd.xlane.f32.xlu0 %v459
        %v461 = vpop.xlane.xlu0 %460
        %v462 = vadd.f32 %v452, %v398
        %v463 = vadd.f32 %v455, %v399
        %v464 = vadd.f32 %v458, %v400
        %v465 = vadd.f32 %v461, %v401
        %v466 = vxor.u32 %v462, 2147483648
        %v467 = vxor.u32 %v463, 2147483648
        %v468 = vxor.u32 %v464, 2147483648
        %v469 = vxor.u32 %v465, 2147483648
        %v470 = vmul.f32 %v466, 1.442695
        %v471 = vpow.pop %v470
        %v472 = vmul.f32 %v467, 1.442695
        %v473 = vpow.pop %v472
        %v474 = vmul.f32 %v468, 1.442695
        %v475 = vpow.pop %v474
        %v476 = vmul.f32 %v469, 1.442695
        %v477 = vpow.pop %v476
        %v478 = vadd.f32 %v471, 1.0
        %v479 = vadd.f32 %v473, 1.0
        %v480 = vadd.f32 %v475, 1.0
        %v481 = vadd.f32 %v477, 1.0
        %v482 = vrcp.pop %v478
        %v483 = vmul.f32 1.0, %v482
        %v484 = vrcp.pop %v479
        %v485 = vmul.f32 1.0, %v484
        %v486 = vrcp.pop %v480
        %v487 = vmul.f32 1.0, %v486
        %v488 = vrcp.pop %v481
        %v489 = vmul.f32 1.0, %v488
        %491 = vset.pattern.permute.xlu0 4
        %492 = vperm.xlu0 %491, %v390
        %v493 = vpop.permute.xlu0 %492
        %496 = vset.pattern.permute.xlu0 4
        %497 = vperm.xlu0 %496, %v392
        %v498 = vpop.permute.xlu0 %497
        %501 = vset.pattern.permute.xlu0 4
        %502 = vperm.xlu0 %501, %v394
        %v503 = vpop.permute.xlu0 %502
        %506 = vset.pattern.permute.xlu0 4
        %507 = vperm.xlu0 %506, %v396
        %v508 = vpop.permute.xlu0 %507
        %v510 = vmul.f32 %v256, %v493
        %v511 = vmul.f32 %v257, %v493
        %v512 = vmul.f32 %v258, %v498
        %v513 = vmul.f32 %v259, %v498
        %v514 = vmul.f32 %v260, %v503
        %v515 = vmul.f32 %v261, %v503
        %v516 = vmul.f32 %v262, %v508
        %v517 = vmul.f32 %v263, %v508
        %519 = vset.pattern.permute.xlu0 4
        %520 = vperm.xlu0 %519, %v483
        %v521 = vpop.permute.xlu0 %520
        %524 = vset.pattern.permute.xlu0 4
        %525 = vperm.xlu0 %524, %v485
        %v526 = vpop.permute.xlu0 %525
        %529 = vset.pattern.permute.xlu0 4
        %530 = vperm.xlu0 %529, %v487
        %v531 = vpop.permute.xlu0 %530
        %534 = vset.pattern.permute.xlu0 4
        %535 = vperm.xlu0 %534, %v489
        %v536 = vpop.permute.xlu0 %535
        %v538 = vmul.f32 %v264, %v521
        %v539 = vmul.f32 %v265, %v521
        %v540 = vmul.f32 %v266, %v526
        %v541 = vmul.f32 %v267, %v526
        %v542 = vmul.f32 %v268, %v531
        %v543 = vmul.f32 %v269, %v531
        %v544 = vmul.f32 %v270, %v536
        %v545 = vmul.f32 %v271, %v536
        %v546 = vadd.f32 %v510, %v538
        %v547 = vadd.f32 %v511, %v539
        %v548 = vadd.f32 %v512, %v540
        %v549 = vadd.f32 %v513, %v541
        %v550 = vadd.f32 %v514, %v542
        %v551 = vadd.f32 %v515, %v543
        %v552 = vadd.f32 %v516, %v544
        %v553 = vadd.f32 %v517, %v545
        %554 = vst [vmem:[%s255] sm:$0xff] %v546
        %555 = vst [vmem:[%s255 + $0x8] sm:$0xff] %v547
        %556 = vst [vmem:[%s255 + $0x10] sm:$0xff] %v548
        %557 = vst [vmem:[%s255 + $0x18] sm:$0xff] %v549
        %558 = vst [vmem:[%s255 + $0x20] sm:$0xff] %v550
        %559 = vst [vmem:[%s255 + $0x28] sm:$0xff] %v551
        %560 = vst [vmem:[%s255 + $0x30] sm:$0xff] %v552
        %561 = vst [vmem:[%s255 + $0x38] sm:$0xff] %v553
        %s562 = sand.u32 %s126, 1
        %s563 = scalar_lea.sflag [#allocation4], %s562
        %s564 = sand.u32 %s126, 1
        %s565 = smul.addr %s564, 64
        %s566 = scalar_lea.vmem [#allocation7], %s565
        // Predicated region
        $region45: #{tpu_custom_call.1} parent=35 // pred_check
          %p567 = pneg %p136
        $region46: #{tpu_custom_call.1} parent=35 // pred_check_branch
          %569 = sbr.rel (%p567) target = $region48
        $region47: #{tpu_custom_call.1} parent=35 // pred_region
          %s571 = ssub.s32 1024, 1024
          %572 = vsyncadd %s563, %s571
          %s573 = smul.addr %s24, 8
          %s574 = smul.addr %s573, 128
          %s575 = scalar_lea.hbm %s4, %s574
          %s576 = sshll.u32 %s566, 4
          %s577 = int_to_ptr.vmem [resolvable:$true] %s576
          %582 = dma.vmem_to_hbm [thread:$0]  %s577, 1024, %s575, %s563, 256, 256, 16
        $region48: #{tpu_custom_call.1} parent=35 // pred_fallthru
          _
      $region36: #{tpu_custom_call.1} parent=5 // pred_fallthru
        _
      %p583 = scmp.le.s32.totalorder 2, %s19
      // Predicated region
      $region49: #{tpu_custom_call.1} parent=5 // pred_check
        %p584 = pneg %p583
      $region50: #{tpu_custom_call.1} parent=5 // pred_check_branch
        %586 = sbr.rel (%p584) target = $region52
      $region51: #{tpu_custom_call.1} parent=5 // pred_region
        %s587 = ssub.s32 %s19, 2
        // Predicated region
        $region53: #{tpu_custom_call.1} parent=51 // pred_check
          %p588 = pneg %p142
        $region54: #{tpu_custom_call.1} parent=51 // pred_check_branch
          %590 = sbr.rel (%p588) target = $region56
        $region55: #{tpu_custom_call.1} parent=51 // pred_region
          %s591 = sand.u32 %s127, 1
          %s592 = scalar_lea.sflag [#allocation4], %s591
          %s593 = sand.u32 %s127, 1
          %s594 = smul.addr %s593, 64
          %s595 = scalar_lea.vmem [#allocation7], %s594
          %596 = dma.done %s592, 1024
        $region56: #{tpu_custom_call.1} parent=51 // pred_fallthru
          _
      $region52: #{tpu_custom_call.1} parent=5 // pred_fallthru
        _
    $region6: #{tpu_custom_call.1} parent=1 // loop_footer
      %s23 = sadd.s32 1, %s19
    $region7: #{tpu_custom_call.1} parent=1 // loop_footer_branch
      %18 = sbr.rel target = $region3
    $region8: #{tpu_custom_call.1} parent=1 // loop_exit
      _
    %597 = vsyncpa [#allocation3], 1
    %s598 = scalar_lea.sflag [#allocation3], 1
    %599 = vsyncpa %s598, 1
    %600 = vsyncpa [#allocation6], 1
    %s601 = scalar_lea.sflag [#allocation6], 1
    %602 = vsyncpa %s601, 1
    %603 = vsyncpa [#allocation4], 1
    %s604 = scalar_lea.sflag [#allocation4], 1
    %605 = vsyncpa %s604, 1

</llo_original>
